<compile_context>
chip_gen: v5e
topology: v5e:2x2
jax: 0.10.0
libtpu: 0.0.40
codegen_flags: <defaults>
</compile_context>

<pallas_src>
import jax
import jax.numpy as jnp
from jax.experimental import pallas as pl
from jax.experimental.pallas import tpu as pltpu

_LANE = 128  # lane width of a vreg


# ------------------------------- helpers ----------------------------------- #
def _cdiv(a, b):
    return (a + b - 1) // b


def squeeze_if_needed(t):
    if t.ndim > 2:
        raise ValueError(f"Trying to squeeze the second dimension out of a tensor "
                         f"with shape: {t.shape}")
    if t.ndim == 2:
        return t[:, 0]
    return t


def _choose_tiling(n, t, logit_itemsize, *, max_tile_elems=65536, min_tiles=4,
                   vmem_tile_budget=8 << 20):
    """Pick (n_tile, num_tiles, n_pad) with lane padding bounded to <128 per tile,
    num_tiles >= min_tiles when there is enough work (v7x megacore), and the
    double-buffered per-step VMEM footprint under vmem_tile_budget."""
    lane_groups = max(1, _cdiv(n, _LANE))
    bytes_per_group = (logit_itemsize + 1) * t * _LANE          # logits + packed i8
    max_groups_vmem = max(1, vmem_tile_budget // (2 * bytes_per_group))
    max_groups = max(1, min(max_tile_elems // _LANE, max_groups_vmem))
    tiles_wanted = max(min_tiles, _cdiv(lane_groups, max_groups))
    tile_groups = min(max(1, _cdiv(lane_groups, tiles_wanted)), max_groups)
    n_tile = tile_groups * _LANE
    num_tiles = _cdiv(lane_groups, tile_groups)
    n_pad = num_tiles * n_tile
    return n_tile, num_tiles, n_pad


# ----------------------------- Pallas kernel ------------------------------- #
def _taskflow_partial_kernel(logits_ref, packed_ref, sum_ref, cnt_ref):
    """One batch tile.

    logits_ref : [T, N_tile]  native dtype (f32 / bf16), upcast in-kernel
    packed_ref : [T, N_tile]  int8, bit0 = target, bit1 = precondition mask
    sum_ref    : [1, T, 128]  f32 per-tile masked-loss partial sums (lane groups)
    cnt_ref    : [1, T, 128]  f32 per-tile mask-count partial sums
    """
    x = logits_ref[...].astype(jnp.float32)
    p = packed_ref[...].astype(jnp.int32)

    m_pred = p >= 2                                   # precondition bit
    y_pred = jnp.bitwise_and(p, 1) == 1               # target bit

    # Numerically stable BCE-with-logits (== torch.nn.BCEWithLogitsLoss):
    #   l = max(x, 0) - x*y + softplus(-|x|);  x*y -> select on the 0/1 target bit.
    per = (jnp.maximum(x, 0.0) - jnp.where(y_pred, x, 0.0)
           + jnp.log1p(jnp.exp(-jnp.abs(x))))
    # Keep loss only where the precondition holds (NaN-safe; padding has mask=0).
    per = jnp.where(m_pred, per, 0.0)
    cnt = jnp.where(m_pred, 1.0, 0.0)

    t, n_tile = per.shape
    n_groups = n_tile // _LANE

    # 128-lane group adds with up to 4 striped accumulators (break the serial VALU
    # dependency chain), pure VPU work — no cross-lane XLU reduce in the kernel.
    stripes = min(4, n_groups)
    s_acc = [per[:, g * _LANE:(g + 1) * _LANE] for g in range(stripes)]
    c_acc = [cnt[:, g * _LANE:(g + 1) * _LANE] for g in range(stripes)]
    for g in range(stripes, n_groups):
        k = g % stripes
        lo = g * _LANE
        s_acc[k] = s_acc[k] + per[:, lo:lo + _LANE]
        c_acc[k] = c_acc[k] + cnt[:, lo:lo + _LANE]

    def _tree(parts):
        while len(parts) > 1:
            nxt = [parts[i] + parts[i + 1] for i in range(0, len(parts) - 1, 2)]
            if len(parts) % 2:
                nxt.append(parts[-1])
            parts = nxt
        return parts[0]

    sum_ref[...] = _tree(s_acc).reshape(1, t, _LANE)
    cnt_ref[...] = _tree(c_acc).reshape(1, t, _LANE)


def _taskflow_loss_pallas(logits_tn, packed_tn, *, n_tile):
    """logits: [T, N_pad] native dtype; packed: [T, N_pad] i8.
    Returns (partial_sums, partial_counts), each [num_tiles, T, 128] f32."""
    t, n_pad = logits_tn.shape
    num_tiles = n_pad // n_tile

    grid_spec = pltpu.PrefetchScalarGridSpec(
        num_scalar_prefetch=0,
        grid=(num_tiles,),
        in_specs=[
            pl.BlockSpec((t, n_tile), lambda i: (0, i)),
            pl.BlockSpec((t, n_tile), lambda i: (0, i)),
        ],
        out_specs=[
            pl.BlockSpec((1, t, _LANE), lambda i: (i, 0, 0)),
            pl.BlockSpec((1, t, _LANE), lambda i: (i, 0, 0)),
        ],
    )
    return pl.pallas_call(
        _taskflow_partial_kernel,
        out_shape=(
            jax.ShapeDtypeStruct((num_tiles, t, _LANE), jnp.float32),
            jax.ShapeDtypeStruct((num_tiles, t, _LANE), jnp.float32),
        ),
        grid_spec=grid_spec,
        compiler_params=pltpu.CompilerParams(
            # No carried state between tiles -> the batch axis can be split across
            # TensorCores (helps v7x; no-op on single-TC v5e/v6e).
            dimension_semantics=("parallel",),
            vmem_limit_bytes=32 * 1024 * 1024,
            # Let XLA fuse the wrapper-side cast/pack producers into the operands
            # instead of materialising extra HBM copies where it can.
            allow_input_fusion=[True, True],
        ),
    )(logits_tn, packed_tn)


# --------------------------- TaskFlowLoss wrapper --------------------------- #
class TaskFlowLoss:
    """JAX/Pallas re-implementation of dnn_cool TaskFlowLoss.forward for a flat
    task flow (binary leaf tasks, BCEWithLogitsLoss each)."""

    def __init__(self, task_names, prefix="", fast_path_elems=65536):
        # TaskFlowLoss.__init__ only builds per-task loss decorators; the leaf
        # losses (BCEWithLogitsLoss) have no learnable parameters.
        self.task_names = [prefix + t for t in task_names]
        self.fast_path_elems = fast_path_elems

    def __call__(self, outputs, targets):
        # Capture the output dtype BEFORE any casting (matches torch.zeros(1,
        # dtype=value.dtype) in the PyTorch module).
        out_dtype = outputs[self.task_names[0]].dtype

        # Dict plumbing: gather per-task logits and a packed target/mask plane.
        # TODO(synk): if the upstream producer can emit already-stacked [T, N]
        # logits + packed-i8 buffers, this stack/pack glue disappears entirely.
        logits, packed = [], []
        for key in self.task_names:
            x = squeeze_if_needed(outputs[key])
            y = squeeze_if_needed(targets[key])
            pre = squeeze_if_needed(outputs[f"precondition|{key}"])
            logits.append(x)                                      # keep native dtype
            m_i8 = pre.astype(jnp.bool_).astype(jnp.int8)
            # TODO(synk): soft (non-0/1) BCE targets would need a separate float
            # target plane; dnn_cool binary tasks use hard 0/1 targets.
            y_i8 = (y.astype(jnp.float32) > 0.5).astype(jnp.int8)
            packed.append(m_i8 * 2 + y_i8)                        # bit1=mask, bit0=y

        logits_tn = jnp.stack(logits, axis=0)    # [T, N] native dtype
        packed_tn = jnp.stack(packed, axis=0)    # [T, N] i8
        t, n = logits_tn.shape

        # Small-input fast path: plain XLA beats kernel launch + glue overhead.
        if t * n <= self.fast_path_elems:
            return self._xla_fallback(logits_tn, packed_tn).astype(out_dtype)

        n_tile, _, n_pad = _choose_tiling(
            n, t, jnp.dtype(logits_tn.dtype).itemsize)

        # Only the lane axis is padded (to a multiple of n_tile, itself chosen so
        # waste is < num_tiles*128 elems).  Padded columns carry packed==0, i.e.
        # mask==0, so they contribute nothing to sums or counts.
        logits_tn = jnp.pad(logits_tn, ((0, 0), (0, n_pad - n)))
        packed_tn = jnp.pad(packed_tn, ((0, 0), (0, n_pad - n)))

        part_sum, part_cnt = _taskflow_loss_pallas(logits_tn, packed_tn, n_tile=n_tile)

        # Tiny finalize kept in the wrapper so the batch grid axis stays "parallel":
        # reduce tiles + lanes, divide, zero-precondition short-circuit, sum tasks.
        task_sum = jnp.sum(part_sum, axis=(0, 2))                 # [T]
        task_cnt = jnp.sum(part_cnt, axis=(0, 2))                 # [T]
        per_task = jnp.where(task_cnt > 0.0,
                             task_sum / jnp.maximum(task_cnt, 1.0),
                             0.0)
        return jnp.sum(per_task).reshape(1).astype(out_dtype)

    @staticmethod
    def _xla_fallback(logits_tn, packed_tn):
        x = logits_tn.astype(jnp.float32)
        p = packed_tn.astype(jnp.int32)
        m = (p >= 2).astype(jnp.float32)
        y = (p % 2).astype(jnp.float32)
        per = jnp.maximum(x, 0.0) - x * y + jnp.log1p(jnp.exp(-jnp.abs(x)))
        s = jnp.sum(per * m, axis=1)
        c = jnp.sum(m, axis=1)
        per_task = jnp.where(c > 0.0, s / jnp.maximum(c, 1.0), 0.0)
        return jnp.sum(per_task).reshape(1)


# --------------------------------- reference -------------------------------- #
def _reference_loss(outputs, targets, task_names):
    total = jnp.zeros((1,), jnp.float32)
    for key in task_names:
        x = squeeze_if_needed(outputs[key]).astype(jnp.float32)
        y = squeeze_if_needed(targets[key]).astype(jnp.float32)
        m = squeeze_if_needed(outputs[f"precondition|{key}"]).astype(jnp.float32)
        per = jnp.maximum(x, 0.0) - x * y + jnp.log1p(jnp.exp(-jnp.abs(x)))
        cnt = jnp.sum(m)
        task_loss = jnp.where(cnt > 0.0, jnp.sum(per * m) / jnp.maximum(cnt, 1.0), 0.0)
        total = total + task_loss
    return total


# ----------------------------------- main ----------------------------------- #
if __name__ == "__main__":
    task_names = ["is_car", "has_driver", "is_red"]

    # ---- check 1: tiny batch (N=16), includes an all-false precondition ---- #
    N = 16
    k1, k2, k3, k4, k5 = jax.random.split(jax.random.PRNGKey(0), 5)
    outputs = {
        "is_car":     jax.random.normal(k1, (N, 1), jnp.float32),
        "has_driver": jax.random.normal(k2, (N, 1), jnp.float32),
        "is_red":     jax.random.normal(k3, (N, 1), jnp.float32),
    }
    targets = {
        "is_car":     jax.random.bernoulli(k4, 0.5, (N,)).astype(jnp.float32),
        "has_driver": jax.random.bernoulli(k5, 0.5, (N,)).astype(jnp.float32),
        "is_red":     jax.random.bernoulli(k1, 0.5, (N,)).astype(jnp.float32),
    }
    outputs["precondition|is_car"] = jnp.ones((N, 1), jnp.bool_)
    outputs["precondition|has_driver"] = (targets["is_car"] > 0.5).reshape(N, 1)
    outputs["precondition|is_red"] = jnp.zeros((N, 1), jnp.bool_)  # zero-count path

    ref = _reference_loss(outputs, targets, task_names)

    # XLA fast path (default threshold).
    loss_fast = jax.block_until_ready(TaskFlowLoss(task_names)(outputs, targets))
    assert loss_fast.shape == (1,)
    assert jnp.allclose(loss_fast, ref, rtol=1e-5, atol=1e-5), (loss_fast, ref)

    # Pallas path forced (single-tile grid).
    loss_pallas = jax.block_until_ready(
        TaskFlowLoss(task_names, fast_path_elems=0)(outputs, targets))
    assert loss_pallas.shape == (1,)
    assert jnp.allclose(loss_pallas, ref, rtol=1e-5, atol=1e-5), (loss_pallas, ref)

    # ---- check 2: multi-tile grid path (N=400 -> 4 grid steps of 128 lanes) - #
    N2 = 400
    ka, kb, kc, kd, ke, kf = jax.random.split(jax.random.PRNGKey(1), 6)
    outputs2 = {
        "is_car":     jax.random.normal(ka, (N2, 1), jnp.float32),
        "has_driver": jax.random.normal(kb, (N2, 1), jnp.float32),
        "is_red":     jax.random.normal(kc, (N2, 1), jnp.float32),
        "precondition|is_car":     jnp.ones((N2, 1), jnp.bool_),
        "precondition|has_driver": jax.random.bernoulli(kd, 0.5, (N2, 1)),
        "precondition|is_red":     jax.random.bernoulli(ke, 0.3, (N2, 1)),
    }
    targets2 = {
        "is_car":     jax.random.bernoulli(kf, 0.5, (N2,)).astype(jnp.float32),
        "has_driver": jax.random.bernoulli(ka, 0.5, (N2,)).astype(jnp.float32),
        "is_red":     jax.random.bernoulli(kb, 0.5, (N2,)).astype(jnp.float32),
    }
    ref2 = _reference_loss(outputs2, targets2, task_names)
    loss2 = jax.block_until_ready(
        TaskFlowLoss(task_names, fast_path_elems=0)(outputs2, targets2))
    assert jnp.allclose(loss2, ref2, rtol=1e-5, atol=1e-5), (loss2, ref2)

    # ---- check 3: bf16 logits stay bf16 in HBM; returned loss is bf16 ------- #
    outputs3 = {k: (v.astype(jnp.bfloat16) if not k.startswith("precondition") else v)
                for k, v in outputs2.items()}
    ref3 = _reference_loss(outputs3, targets2, task_names)
    loss3 = jax.block_until_ready(
        TaskFlowLoss(task_names, fast_path_elems=0)(outputs3, targets2))
    assert loss3.dtype == jnp.bfloat16, loss3.dtype
    assert jnp.allclose(loss3.astype(jnp.float32), ref3, rtol=2e-2, atol=2e-2), (loss3, ref3)

    # TODO(synk): nested child TaskFlowLoss flows (tasks with children) and the
    # catalyst-callback plumbing are not instantiated here; the synthetic flat
    # flow exercises the same kernel path.
    print("KERNEL_OK")
</pallas_src>

<mosaic_0001>
module attributes {stable_mosaic.version = 11 : i64} {
  func.func @_taskflow_partial_kernel(%arg0: i32, %arg1: memref<3x128xf32, #tpu.memory_space<vmem>>, %arg2: memref<3x128xi8, #tpu.memory_space<vmem>>, %arg3: memref<1x3x128xf32, #tpu.memory_space<vmem>>, %arg4: memref<1x3x128xf32, #tpu.memory_space<vmem>>) attributes {dimension_semantics = [#tpu.dimension_semantics<parallel>], iteration_bounds = array<i64: 1>, scalar_prefetch = 0 : i64, scratch_operands = 0 : i64, tpu.core_type = #tpu.core_type<tc>, window_params = [{transform_indices = @transform_0, window_bounds = array<i64: 3, 128>}, {transform_indices = @transform_1, window_bounds = array<i64: 3, 128>}, {transform_indices = @transform_2, window_bounds = array<i64: 1, 3, 128>}, {transform_indices = @transform_3, window_bounds = array<i64: 1, 3, 128>}]} {
    %c0 = arith.constant 0 : index
    %c0_0 = arith.constant 0 : index
    %0 = vector.load %arg1[%c0, %c0_0] : memref<3x128xf32, #tpu.memory_space<vmem>>, vector<3x128xf32>
    %c0_1 = arith.constant 0 : index
    %c0_2 = arith.constant 0 : index
    %1 = vector.load %arg2[%c0_1, %c0_2] : memref<3x128xi8, #tpu.memory_space<vmem>>, vector<3x128xi8>
    %2 = arith.extsi %1 : vector<3x128xi8> to vector<3x128xi32>
    %c2_i32 = arith.constant 2 : i32
    %3 = vector.broadcast %c2_i32 : i32 to vector<3x128xi32>
    %4 = arith.cmpi sge, %2, %3 : vector<3x128xi32>
    %c1_i32 = arith.constant 1 : i32
    %5 = vector.broadcast %c1_i32 : i32 to vector<3x128xi32>
    %6 = arith.andi %2, %5 : vector<3x128xi32>
    %c1_i32_3 = arith.constant 1 : i32
    %7 = vector.broadcast %c1_i32_3 : i32 to vector<3x128xi32>
    %8 = arith.cmpi eq, %6, %7 : vector<3x128xi32>
    %cst = arith.constant 0.000000e+00 : f32
    %9 = vector.broadcast %cst : f32 to vector<3x128xf32>
    %10 = arith.maximumf %0, %9 : vector<3x128xf32>
    %cst_4 = arith.constant 0.000000e+00 : f32
    %11 = vector.broadcast %cst_4 : f32 to vector<3x128xf32>
    %12 = arith.select %8, %0, %11 : vector<3x128xi1>, vector<3x128xf32>
    %13 = arith.subf %10, %12 : vector<3x128xf32>
    %14 = math.absf %0 : vector<3x128xf32>
    %cst_5 = arith.constant 0.000000e+00 : f32
    %15 = vector.broadcast %cst_5 : f32 to vector<3x128xf32>
    %16 = arith.subf %15, %14 : vector<3x128xf32>
    %17 = math.exp %16 : vector<3x128xf32>
    %18 = math.log1p %17 : vector<3x128xf32>
    %19 = arith.addf %13, %18 : vector<3x128xf32>
    %cst_6 = arith.constant 0.000000e+00 : f32
    %20 = vector.broadcast %cst_6 : f32 to vector<3x128xf32>
    %21 = arith.select %4, %19, %20 : vector<3x128xi1>, vector<3x128xf32>
    %cst_7 = arith.constant 1.000000e+00 : f32
    %cst_8 = arith.constant 0.000000e+00 : f32
    %22 = vector.broadcast %cst_7 : f32 to vector<3x128xf32>
    %23 = vector.broadcast %cst_8 : f32 to vector<3x128xf32>
    %24 = arith.select %4, %22, %23 : vector<3x128xi1>, vector<3x128xf32>
    %25 = vector.shape_cast %21 : vector<3x128xf32> to vector<1x3x128xf32>
    %c0_9 = arith.constant 0 : index
    %c0_10 = arith.constant 0 : index
    %c0_11 = arith.constant 0 : index
    %26 = vector.load %arg3[%c0_9, %c0_10, %c0_11] : memref<1x3x128xf32, #tpu.memory_space<vmem>>, vector<1x3x128xf32>
    tpu.vector_store %arg3[%c0_9, %c0_10, %c0_11], %25 {strides = array<i32>} : memref<1x3x128xf32, #tpu.memory_space<vmem>>, vector<1x3x128xf32>,
    %27 = vector.shape_cast %24 : vector<3x128xf32> to vector<1x3x128xf32>
    %c0_12 = arith.constant 0 : index
    %c0_13 = arith.constant 0 : index
    %c0_14 = arith.constant 0 : index
    %28 = vector.load %arg4[%c0_12, %c0_13, %c0_14] : memref<1x3x128xf32, #tpu.memory_space<vmem>>, vector<1x3x128xf32>
    tpu.vector_store %arg4[%c0_12, %c0_13, %c0_14], %27 {strides = array<i32>} : memref<1x3x128xf32, #tpu.memory_space<vmem>>, vector<1x3x128xf32>,
    return
  }
  func.func @transform_0(%arg0: i32) -> (i32, i32) {
    %c0_i32 = arith.constant 0 : i32
    %c0_i32_0 = arith.constant 0 : i32
    return %c0_i32, %arg0 : i32, i32
  }
  func.func @transform_1(%arg0: i32) -> (i32, i32) {
    %c0_i32 = arith.constant 0 : i32
    %c0_i32_0 = arith.constant 0 : i32
    return %c0_i32, %arg0 : i32, i32
  }
  func.func @transform_2(%arg0: i32) -> (i32, i32, i32) {
    %c0_i32 = arith.constant 0 : i32
    %c0_i32_0 = arith.constant 0 : i32
    %c0_i32_1 = arith.constant 0 : i32
    return %arg0, %c0_i32, %c0_i32_0 : i32, i32, i32
  }
  func.func @transform_3(%arg0: i32) -> (i32, i32, i32) {
    %c0_i32 = arith.constant 0 : i32
    %c0_i32_0 = arith.constant 0 : i32
    %c0_i32_1 = arith.constant 0 : i32
    return %arg0, %c0_i32, %c0_i32_0 : i32, i32, i32
  }
}

</mosaic_0001>

<llo_original>
// kernel: tpu_custom_call.1
$region0: #{tpu_custom_call.1}
  #allocation0 [shape = 'u32[]', space=smem, size = 0x4, offset = 0x4, fixed_abs, tag = 'smem constant byte address 0x4 - core index']
  #allocation1 [shape = 'u32[72,128]{1,0:T(1,128)}', space=vmem, size = 0x9000, scoped, tag = 'internal scratch']
  %s0 = inlined_call_operand.hbm [shape: f32[3,128], index: 0, kind: input, shape index: {}]
  %s1 = inlined_call_operand.hbm [shape: s8[3,128], index: 1, kind: input, shape index: {}]
  %s2 = inlined_call_operand.vmem [shape: f32[1,3,128], index: 2, kind: output, shape index: {0}]
  %s3 = inlined_call_operand.vmem [shape: f32[1,3,128], index: 3, kind: output, shape index: {1}]
  %4 = xla_tuple %s2, %s3
  %s5 = sld [smem:[#allocation0]]
  $region34: #{tpu_custom_call.1} parent=0
    _
  %s7 = ssub.s32 1, %s5
  %s8 = scalar_select 0, %s7, %s5
  $region1: #{tpu_custom_call.1} parent=0
    #allocation2 [shape = 'u8[2048]{0}', space=vmem, size = 0x800, scoped, tag = 'input window, operand 0, single buffered']
    #allocation3 [shape = 's32[1]{0}', space=sflag, size = 0x4, scoped, tag = 'scoped memory for tpu_custom_call.1']
    #allocation4 [shape = 'u8[512]{0}', space=vmem, size = 0x400, scoped, tag = 'input window, operand 1, single buffered']
    #allocation5 [shape = 's32[1]{0}', space=sflag, size = 0x4, scoped, tag = 'scoped memory for tpu_custom_call.1']
    %9 = vsyncpa [#allocation3], 0
    %10 = vsyncpa [#allocation5], 0
    // Predicated region
    $region2: #{tpu_custom_call.1} parent=1 // pred_check
      _
    $region3: #{tpu_custom_call.1} parent=1 // pred_check_branch
      %12 = sbr.rel (0) target = $region5
    $region4: #{tpu_custom_call.1} parent=1 // pred_region
      %14 = vsyncadd [#allocation3], 0
      %s16 = sshll.u32 %s0, 4
      %s17 = int_to_ptr.hbm [resolvable:$true] %s16
      %s18 = sshll.u32 [#allocation2], 4
      %s19 = int_to_ptr.vmem [resolvable:$true] %s18
      %21 = dma.hbm_to_vmem [thread:$0]  %s17, 64, %s19, [#allocation3]
    $region5: #{tpu_custom_call.1} parent=1 // pred_fallthru
      _
    // Predicated region
    $region6: #{tpu_custom_call.1} parent=1 // pred_check
      _
    $region7: #{tpu_custom_call.1} parent=1 // pred_check_branch
      %23 = sbr.rel (0) target = $region9
    $region8: #{tpu_custom_call.1} parent=1 // pred_region
      %25 = vsyncadd [#allocation5], 0
      %s27 = sshll.u32 %s1, 4
      %s28 = int_to_ptr.hbm [resolvable:$true] %s27
      %s29 = sshll.u32 [#allocation4], 4
      %s30 = int_to_ptr.vmem [resolvable:$true] %s29
      %32 = dma.hbm_to_vmem [thread:$0]  %s28, 16, %s30, [#allocation5]
    $region9: #{tpu_custom_call.1} parent=1 // pred_fallthru
      _
    // Predicated region
    $region10: #{tpu_custom_call.1} parent=1 // pred_check
      _
    $region11: #{tpu_custom_call.1} parent=1 // pred_check_branch
      %34 = sbr.rel (0) target = $region13
    $region12: #{tpu_custom_call.1} parent=1 // pred_region
      %36 = dma.done [#allocation3], 64
    $region13: #{tpu_custom_call.1} parent=1 // pred_fallthru
      _
    // Predicated region
    $region14: #{tpu_custom_call.1} parent=1 // pred_check
      _
    $region15: #{tpu_custom_call.1} parent=1 // pred_check_branch
      %38 = sbr.rel (0) target = $region17
    $region16: #{tpu_custom_call.1} parent=1 // pred_region
      %40 = dma.done [#allocation5], 16
    $region17: #{tpu_custom_call.1} parent=1 // pred_fallthru
      _
    %v41 = vld [vmem:[#allocation2] sm:$0x7]
    %v42 = vld [vmem:[#allocation4] sm:$0x1]
    %v43 = vunpack.c.0.s8 %v42
    %vm44 = vcmp.ge.s32.totalorder %v43, 2
    %v45 = vand.u32 %v43, 1
    %vm46 = vcmp.eq.s32.totalorder %v45, 1
    %v47 = vmax.f32 %v41, 0.0
    %v48 = vsel %vm46, %v41, 0.0
    %v49 = vsub.f32 %v47, %v48
    %v50 = vand.u32 2147483647, %v41
    %v51 = vsub.f32 0.0, %v50
    %v52 = vmul.f32 %v51, 1.442695
    %v53 = vpow.pop %v52
    %v54 = vadd.f32 %v53, 1.0
    %v55 = vlog2.pop %v54
    %v56 = vmul.f32 %v55, 0.6931472
    %v57 = vmul.f32 -0.5, %v53
    %v58 = vadd.f32 %v57, 1.0
    %v59 = vmul.f32 %v58, %v53
    %v60 = vand.u32 2147483647, %v53
    %vm61 = vcmp.lt.f32.partialorder %v60, 0.0004427343
    %v62 = vsel %vm61, %v59, %v56
    %v63 = vadd.f32 %v49, %v62
    %v64 = vsel %vm44, %v63, 0.0
    %v65 = vsel %vm44, 1.0, 0.0
    %66 = vst [vmem:[%s2] sm:$0x7] %v64
    %67 = vst [vmem:[%s3] sm:$0x7] %v65
    // Predicated region
    $region18: #{tpu_custom_call.1} parent=1 // pred_check
      _
    $region19: #{tpu_custom_call.1} parent=1 // pred_check_branch
      %69 = sbr.rel (0) target = $region21
    $region20: #{tpu_custom_call.1} parent=1 // pred_region
      _
    $region21: #{tpu_custom_call.1} parent=1 // pred_fallthru
      _
    // Predicated region
    $region22: #{tpu_custom_call.1} parent=1 // pred_check
      _
    $region23: #{tpu_custom_call.1} parent=1 // pred_check_branch
      %71 = sbr.rel (0) target = $region25
    $region24: #{tpu_custom_call.1} parent=1 // pred_region
      _
    $region25: #{tpu_custom_call.1} parent=1 // pred_fallthru
      _
    // Predicated region
    $region26: #{tpu_custom_call.1} parent=1 // pred_check
      _
    $region27: #{tpu_custom_call.1} parent=1 // pred_check_branch
      %73 = sbr.rel (0) target = $region29
    $region28: #{tpu_custom_call.1} parent=1 // pred_region
      _
    $region29: #{tpu_custom_call.1} parent=1 // pred_fallthru
      _
    // Predicated region
    $region30: #{tpu_custom_call.1} parent=1 // pred_check
      _
    $region31: #{tpu_custom_call.1} parent=1 // pred_check_branch
      %75 = sbr.rel (0) target = $region33
    $region32: #{tpu_custom_call.1} parent=1 // pred_region
      _
    $region33: #{tpu_custom_call.1} parent=1 // pred_fallthru
      _
    %76 = vsyncpa [#allocation3], 1
    %77 = vsyncpa [#allocation5], 1

</llo_original>
